<compile_context>
chip_gen: v7x
topology: tpu7x:2x2x1
jax: 0.10.0
libtpu: 0.0.40
codegen_flags: <defaults>
</compile_context>

<pallas_src>
import jax
import jax.numpy as jnp
from jax.experimental import pallas as pl
from jax.experimental.pallas import tpu as pltpu


def _logreg_kernel(x_ref, w_ref, b_ref, o_ref):
    # x_ref: (rb, 128, in_size)  batch tile (features on the lane axis)
    # w_ref: (1, 1, in_size)     full weight, resident across the grid
    # b_ref: (1,)                bias scalar in SMEM
    # o_ref: (rb, 128)           lane-dense output tile (128 batch rows / row)
    x = x_ref[...].astype(jnp.float32)
    w = w_ref[...].astype(jnp.float32)
    # VPU multiply + XLU cross-lane reduce (GEMV); f32 accumulation.
    logits = jnp.sum(x * w, axis=-1) + b_ref[0]          # (rb, 128) f32
    o_ref[...] = jax.nn.sigmoid(logits).astype(o_ref.dtype)


def _pick_tile_row_groups(num_row_groups, in_size, itemsize,
                          target_bytes=4 * 1024 * 1024):
    """Rows-of-128 per grid step, targeting ~4 MiB of x per tile."""
    bytes_per_group = 128 * in_size * itemsize
    groups = max(1, target_bytes // bytes_per_group)
    # Multiple of 8 (sublane-friendly output tile) unless one tile covers all.
    return min(num_row_groups, max(8, (groups // 8) * 8))


@jax.jit
def logistic_regression_forward(x, weight, bias):
    """x: (B, in_size); weight: (1, in_size); bias: (1,) -> (B, 1) in x.dtype."""
    B, in_size = x.shape
    out_dtype = x.dtype

    # Pack the batch 128-per-lane-row; pad the tail (padded rows are sliced off).
    R = pl.cdiv(B, 128)
    B_pad = R * 128
    if B_pad != B:
        x = jnp.pad(x, ((0, B_pad - B), (0, 0)))
    x3 = x.reshape(R, 128, in_size)                      # contiguous view

    w3 = weight.reshape(1, 1, in_size).astype(jnp.float32)
    b1 = bias.reshape(1).astype(jnp.float32)

    rb = _pick_tile_row_groups(R, in_size, x.dtype.itemsize)
    grid = (pl.cdiv(R, rb),)

    out2 = pl.pallas_call(
        _logreg_kernel,
        out_shape=jax.ShapeDtypeStruct((R, 128), out_dtype),
        grid_spec=pltpu.PrefetchScalarGridSpec(
            num_scalar_prefetch=0,
            grid=grid,
            in_specs=[
                pl.BlockSpec((rb, 128, in_size), lambda i: (i, 0, 0)),   # x tile
                pl.BlockSpec((1, 1, in_size), lambda i: (0, 0, 0)),      # weight
                pl.BlockSpec(memory_space=pltpu.MemorySpace.SMEM),       # bias
            ],
            out_specs=pl.BlockSpec((rb, 128), lambda i: (i, 0)),
        ),
        compiler_params=pltpu.CompilerParams(
            dimension_semantics=("parallel",),
            vmem_limit_bytes=32 * 1024 * 1024,
        ),
    )(x3, w3, b1)

    # (R, 128) -> (B_pad, 1) -> (B, 1)
    return out2.reshape(B_pad, 1)[:B]


if __name__ == "__main__":
    key = jax.random.PRNGKey(0)
    kx, kw, kb = jax.random.split(key, 3)

    batch = 10        # deliberately not a multiple of 8/128: exercises tail path
    in_size = 32      # e.g. number of League-of-Legends match features

    x = jax.random.normal(kx, (batch, in_size), dtype=jnp.float32)

    # Deterministic init matching nn.Linear(in_size, 1): U(-1/sqrt(in), 1/sqrt(in))
    bound = 1.0 / (in_size ** 0.5)
    weight = jax.random.uniform(kw, (1, in_size), jnp.float32, -bound, bound)
    bias = jax.random.uniform(kb, (1,), jnp.float32, -bound, bound)

    out = jax.block_until_ready(logistic_regression_forward(x, weight, bias))

    # Reference check against plain JAX (same semantics as the torch forward).
    ref = jax.nn.sigmoid(x @ weight.T + bias)
    assert out.shape == (batch, 1)
    assert jnp.allclose(out, ref, atol=1e-5, rtol=1e-5)

    print("KERNEL_OK")
</pallas_src>

<mosaic_0001>
module attributes {stable_mosaic.version = 11 : i64} {
  func.func @_logreg_kernel(%arg0: i32, %arg1: memref<1x128x32xf32, #tpu.memory_space<vmem>>, %arg2: memref<1x1x32xf32, #tpu.memory_space<vmem>>, %arg3: memref<1xf32, #tpu.memory_space<smem>>, %arg4: memref<1x128xf32, #tpu.memory_space<vmem>>) attributes {dimension_semantics = [#tpu.dimension_semantics<parallel>], iteration_bounds = array<i64: 1>, scalar_prefetch = 0 : i64, scratch_operands = 0 : i64, tpu.core_type = #tpu.core_type<tc>, window_params = [{transform_indices = @transform_0, window_bounds = array<i64: 1, 128, 32>}, {pipeline_mode = #tpu.pipeline_mode<synchronous>, transform_indices = @transform_1, window_bounds = array<i64: 1, 1, 32>}, {transform_indices = @transform_2, window_bounds = array<i64: 1>}, {transform_indices = @transform_3, window_bounds = array<i64: 1, 128>}]} {
    %c0 = arith.constant 0 : index
    %c0_0 = arith.constant 0 : index
    %c0_1 = arith.constant 0 : index
    %0 = vector.load %arg1[%c0, %c0_0, %c0_1] : memref<1x128x32xf32, #tpu.memory_space<vmem>>, vector<1x128x32xf32>
    %c0_2 = arith.constant 0 : index
    %c0_3 = arith.constant 0 : index
    %c0_4 = arith.constant 0 : index
    %1 = vector.load %arg2[%c0_2, %c0_3, %c0_4] : memref<1x1x32xf32, #tpu.memory_space<vmem>>, vector<1x1x32xf32>
    %2 = vector.broadcast %1 : vector<1x1x32xf32> to vector<1x128x32xf32>
    %3 = arith.mulf %0, %2 : vector<1x128x32xf32>
    %cst = arith.constant dense<0.000000e+00> : vector<1x128xf32>
    %4 = vector.multi_reduction <add>, %3, %cst [2] : vector<1x128x32xf32> to vector<1x128xf32>
    %c0_5 = arith.constant 0 : index
    %5 = memref.load %arg3[%c0_5] : memref<1xf32, #tpu.memory_space<smem>>
    %6 = vector.broadcast %5 : f32 to vector<1x128xf32>
    %7 = arith.addf %4, %6 : vector<1x128xf32>
    %8 = arith.negf %7 : vector<1x128xf32>
    %9 = math.exp %8 : vector<1x128xf32>
    %cst_6 = arith.constant 1.000000e+00 : f32
    %10 = vector.broadcast %cst_6 : f32 to vector<1x128xf32>
    %11 = arith.addf %10, %9 : vector<1x128xf32>
    %12 = arith.divf %10, %11 : vector<1x128xf32>
    %c0_7 = arith.constant 0 : index
    %c0_8 = arith.constant 0 : index
    %13 = vector.load %arg4[%c0_7, %c0_8] : memref<1x128xf32, #tpu.memory_space<vmem>>, vector<1x128xf32>
    tpu.vector_store %arg4[%c0_7, %c0_8], %12 {strides = array<i32>} : memref<1x128xf32, #tpu.memory_space<vmem>>, vector<1x128xf32>,
    return
  }
  func.func @transform_0(%arg0: i32) -> (i32, i32, i32) {
    %c0_i32 = arith.constant 0 : i32
    %c0_i32_0 = arith.constant 0 : i32
    %c0_i32_1 = arith.constant 0 : i32
    return %arg0, %c0_i32, %c0_i32_0 : i32, i32, i32
  }
  func.func @transform_1(%arg0: i32) -> (i32, i32, i32) {
    %c0_i32 = arith.constant 0 : i32
    %c0_i32_0 = arith.constant 0 : i32
    %c0_i32_1 = arith.constant 0 : i32
    %c0_i32_2 = arith.constant 0 : i32
    return %c0_i32, %c0_i32_0, %c0_i32_1 : i32, i32, i32
  }
  func.func @transform_2(%arg0: i32) -> i32 {
    %c0_i32 = arith.constant 0 : i32
    %c0_i32_0 = arith.constant 0 : i32
    return %c0_i32 : i32
  }
  func.func @transform_3(%arg0: i32) -> (i32, i32) {
    %c0_i32 = arith.constant 0 : i32
    %c0_i32_0 = arith.constant 0 : i32
    return %arg0, %c0_i32 : i32, i32
  }
}

</mosaic_0001>

<llo_original>
// kernel: logistic_regression_forward.1
$region0: #{logistic_regression_forward.1}
  #allocation0 [shape = 'u32[]', space=smem, size = 0x4, offset = 0x4, fixed_abs, tag = 'smem constant byte address 0x4 - core index']
  #allocation1 [shape = 'u32[144,128]{1,0:T(1,128)}', space=vmem, size = 0x12000, scoped, tag = 'internal scratch']
  #allocation2 [shape = 'f32[1]{0:T(128)S(6)}', space=smem, size = 0x200, scoped, tag = 'scoped memory for logistic_regression_forward.1']
  %s0 = inlined_call_operand.vmem [shape: f32[1,128,32], index: 0, kind: input, shape index: {}]
  %s1 = inlined_call_operand.vmem [shape: f32[1,1,32], index: 1, kind: input, shape index: {}]
  %s2 = inlined_call_operand.<no memory space> [shape: f32[1], index: 2, kind: input, shape index: {}]
  %s3 = inlined_call_operand.vmem [shape: f32[1,128], index: 3, kind: output, shape index: {}]
  %s4 = sld [smem:[#allocation0]]
  $region22: #{logistic_regression_forward.1} parent=0
    _
  %s6 = ssub.s32 1, %s4
  %s7 = scalar_select 0, %s6, %s4
  %8 = sst [smem:[#allocation2]] %s2
  // Predicated region
  $region2: #{logistic_regression_forward.1} parent=0 // pred_check
    _
  $region3: #{logistic_regression_forward.1} parent=0 // pred_check_branch
    %10 = sbr.rel (0) target = $region5
  $region4: #{logistic_regression_forward.1} parent=0 // pred_region
    _
  $region5: #{logistic_regression_forward.1} parent=0 // pred_fallthru
    _
  // Predicated region
  $region6: #{logistic_regression_forward.1} parent=0 // pred_check
    _
  $region7: #{logistic_regression_forward.1} parent=0 // pred_check_branch
    %12 = sbr.rel (0) target = $region9
  $region8: #{logistic_regression_forward.1} parent=0 // pred_region
    _
  $region9: #{logistic_regression_forward.1} parent=0 // pred_fallthru
    _
  // Predicated region
  $region10: #{logistic_regression_forward.1} parent=0 // pred_check
    _
  $region11: #{logistic_regression_forward.1} parent=0 // pred_check_branch
    %14 = sbr.rel (0) target = $region13
  $region12: #{logistic_regression_forward.1} parent=0 // pred_region
    _
  $region13: #{logistic_regression_forward.1} parent=0 // pred_fallthru
    _
  %v15 = vld [vmem:[%s0] sm:$0xff]
  %v16 = vld [vmem:[%s0 + $0x8] sm:$0xff]
  %v17 = vld [vmem:[%s0 + $0x10] sm:$0xff]
  %v18 = vld [vmem:[%s0 + $0x18] sm:$0xff]
  %v19 = vld [vmem:[%s0 + $0x20] sm:$0xff]
  %v20 = vld [vmem:[%s0 + $0x28] sm:$0xff]
  %v21 = vld [vmem:[%s0 + $0x30] sm:$0xff]
  %v22 = vld [vmem:[%s0 + $0x38] sm:$0xff]
  %v23 = vld [vmem:[%s0 + $0x40] sm:$0xff]
  %v24 = vld [vmem:[%s0 + $0x48] sm:$0xff]
  %v25 = vld [vmem:[%s0 + $0x50] sm:$0xff]
  %v26 = vld [vmem:[%s0 + $0x58] sm:$0xff]
  %v27 = vld [vmem:[%s0 + $0x60] sm:$0xff]
  %v28 = vld [vmem:[%s0 + $0x68] sm:$0xff]
  %v29 = vld [vmem:[%s0 + $0x70] sm:$0xff]
  %v30 = vld [vmem:[%s0 + $0x78] sm:$0xff]
  %v31 = vld [vmem:[%s1] sm:$0x1]
  %v33 = vlaneseq
  %v34 = vshrl.u32 %v33, 7
  %v35 = vsub.s32 0, %v34
  %v36 = vrot.slane %v31, %v35
  %v38 = vmul.f32 %v15, %v36
  %v39 = vmul.f32 %v16, %v36
  %v40 = vmul.f32 %v17, %v36
  %v41 = vmul.f32 %v18, %v36
  %v42 = vmul.f32 %v19, %v36
  %v43 = vmul.f32 %v20, %v36
  %v44 = vmul.f32 %v21, %v36
  %v45 = vmul.f32 %v22, %v36
  %v46 = vmul.f32 %v23, %v36
  %v47 = vmul.f32 %v24, %v36
  %v48 = vmul.f32 %v25, %v36
  %v49 = vmul.f32 %v26, %v36
  %v50 = vmul.f32 %v27, %v36
  %v51 = vmul.f32 %v28, %v36
  %v52 = vmul.f32 %v29, %v36
  %v53 = vmul.f32 %v30, %v36
  %vm54 = vcmask 261120
  %v55 = vsel %vm54, %v38, 0.0
  %56 = vadd.xlane.f32.xlu0 %v55
  %v57 = vpop.xlane.xlu0 %56
  %v58 = vsel %vm54, %v39, 0.0
  %59 = vadd.xlane.f32.xlu0 %v58
  %v60 = vpop.xlane.xlu0 %59
  %v61 = vsel %vm54, %v40, 0.0
  %62 = vadd.xlane.f32.xlu0 %v61
  %v63 = vpop.xlane.xlu0 %62
  %v64 = vsel %vm54, %v41, 0.0
  %65 = vadd.xlane.f32.xlu0 %v64
  %v66 = vpop.xlane.xlu0 %65
  %v67 = vsel %vm54, %v42, 0.0
  %68 = vadd.xlane.f32.xlu0 %v67
  %v69 = vpop.xlane.xlu0 %68
  %v70 = vsel %vm54, %v43, 0.0
  %71 = vadd.xlane.f32.xlu0 %v70
  %v72 = vpop.xlane.xlu0 %71
  %v73 = vsel %vm54, %v44, 0.0
  %74 = vadd.xlane.f32.xlu0 %v73
  %v75 = vpop.xlane.xlu0 %74
  %v76 = vsel %vm54, %v45, 0.0
  %77 = vadd.xlane.f32.xlu0 %v76
  %v78 = vpop.xlane.xlu0 %77
  %v79 = vsel %vm54, %v46, 0.0
  %80 = vadd.xlane.f32.xlu0 %v79
  %v81 = vpop.xlane.xlu0 %80
  %v82 = vsel %vm54, %v47, 0.0
  %83 = vadd.xlane.f32.xlu0 %v82
  %v84 = vpop.xlane.xlu0 %83
  %v85 = vsel %vm54, %v48, 0.0
  %86 = vadd.xlane.f32.xlu0 %v85
  %v87 = vpop.xlane.xlu0 %86
  %v88 = vsel %vm54, %v49, 0.0
  %89 = vadd.xlane.f32.xlu0 %v88
  %v90 = vpop.xlane.xlu0 %89
  %v91 = vsel %vm54, %v50, 0.0
  %92 = vadd.xlane.f32.xlu0 %v91
  %v93 = vpop.xlane.xlu0 %92
  %v94 = vsel %vm54, %v51, 0.0
  %95 = vadd.xlane.f32.xlu0 %v94
  %v96 = vpop.xlane.xlu0 %95
  %v97 = vsel %vm54, %v52, 0.0
  %98 = vadd.xlane.f32.xlu0 %v97
  %v99 = vpop.xlane.xlu0 %98
  %v100 = vsel %vm54, %v53, 0.0
  %101 = vadd.xlane.f32.xlu0 %v100
  %v102 = vpop.xlane.xlu0 %101
  %s103 = sld [smem:[#allocation2]]
  %v104 = vstv %s103
  %v105 = vadd.f32 %v57, %v104
  %v106 = vadd.f32 %v60, %v104
  %v107 = vadd.f32 %v63, %v104
  %v108 = vadd.f32 %v66, %v104
  %v109 = vadd.f32 %v69, %v104
  %v110 = vadd.f32 %v72, %v104
  %v111 = vadd.f32 %v75, %v104
  %v112 = vadd.f32 %v78, %v104
  %v113 = vadd.f32 %v81, %v104
  %v114 = vadd.f32 %v84, %v104
  %v115 = vadd.f32 %v87, %v104
  %v116 = vadd.f32 %v90, %v104
  %v117 = vadd.f32 %v93, %v104
  %v118 = vadd.f32 %v96, %v104
  %v119 = vadd.f32 %v99, %v104
  %v120 = vadd.f32 %v102, %v104
  %v121 = vxor.u32 %v105, 2147483648
  %v122 = vxor.u32 %v106, 2147483648
  %v123 = vxor.u32 %v107, 2147483648
  %v124 = vxor.u32 %v108, 2147483648
  %v125 = vxor.u32 %v109, 2147483648
  %v126 = vxor.u32 %v110, 2147483648
  %v127 = vxor.u32 %v111, 2147483648
  %v128 = vxor.u32 %v112, 2147483648
  %v129 = vxor.u32 %v113, 2147483648
  %v130 = vxor.u32 %v114, 2147483648
  %v131 = vxor.u32 %v115, 2147483648
  %v132 = vxor.u32 %v116, 2147483648
  %v133 = vxor.u32 %v117, 2147483648
  %v134 = vxor.u32 %v118, 2147483648
  %v135 = vxor.u32 %v119, 2147483648
  %v136 = vxor.u32 %v120, 2147483648
  %v137 = vmul.f32 %v121, 1.442695
  %v138 = vpow.pop %v137
  %v139 = vmul.f32 %v122, 1.442695
  %v140 = vpow.pop %v139
  %v141 = vmul.f32 %v123, 1.442695
  %v142 = vpow.pop %v141
  %v143 = vmul.f32 %v124, 1.442695
  %v144 = vpow.pop %v143
  %v145 = vmul.f32 %v125, 1.442695
  %v146 = vpow.pop %v145
  %v147 = vmul.f32 %v126, 1.442695
  %v148 = vpow.pop %v147
  %v149 = vmul.f32 %v127, 1.442695
  %v150 = vpow.pop %v149
  %v151 = vmul.f32 %v128, 1.442695
  %v152 = vpow.pop %v151
  %v153 = vmul.f32 %v129, 1.442695
  %v154 = vpow.pop %v153
  %v155 = vmul.f32 %v130, 1.442695
  %v156 = vpow.pop %v155
  %v157 = vmul.f32 %v131, 1.442695
  %v158 = vpow.pop %v157
  %v159 = vmul.f32 %v132, 1.442695
  %v160 = vpow.pop %v159
  %v161 = vmul.f32 %v133, 1.442695
  %v162 = vpow.pop %v161
  %v163 = vmul.f32 %v134, 1.442695
  %v164 = vpow.pop %v163
  %v165 = vmul.f32 %v135, 1.442695
  %v166 = vpow.pop %v165
  %v167 = vmul.f32 %v136, 1.442695
  %v168 = vpow.pop %v167
  %v169 = vadd.f32 %v138, 1.0
  %v170 = vadd.f32 %v140, 1.0
  %v171 = vadd.f32 %v142, 1.0
  %v172 = vadd.f32 %v144, 1.0
  %v173 = vadd.f32 %v146, 1.0
  %v174 = vadd.f32 %v148, 1.0
  %v175 = vadd.f32 %v150, 1.0
  %v176 = vadd.f32 %v152, 1.0
  %v177 = vadd.f32 %v154, 1.0
  %v178 = vadd.f32 %v156, 1.0
  %v179 = vadd.f32 %v158, 1.0
  %v180 = vadd.f32 %v160, 1.0
  %v181 = vadd.f32 %v162, 1.0
  %v182 = vadd.f32 %v164, 1.0
  %v183 = vadd.f32 %v166, 1.0
  %v184 = vadd.f32 %v168, 1.0
  %v185 = vrcp.pop %v169
  %v186 = vmul.f32 1.0, %v185
  %v187 = vrcp.pop %v170
  %v188 = vmul.f32 1.0, %v187
  %v189 = vrcp.pop %v171
  %v190 = vmul.f32 1.0, %v189
  %v191 = vrcp.pop %v172
  %v192 = vmul.f32 1.0, %v191
  %v193 = vrcp.pop %v173
  %v194 = vmul.f32 1.0, %v193
  %v195 = vrcp.pop %v174
  %v196 = vmul.f32 1.0, %v195
  %v197 = vrcp.pop %v175
  %v198 = vmul.f32 1.0, %v197
  %v199 = vrcp.pop %v176
  %v200 = vmul.f32 1.0, %v199
  %v201 = vrcp.pop %v177
  %v202 = vmul.f32 1.0, %v201
  %v203 = vrcp.pop %v178
  %v204 = vmul.f32 1.0, %v203
  %v205 = vrcp.pop %v179
  %v206 = vmul.f32 1.0, %v205
  %v207 = vrcp.pop %v180
  %v208 = vmul.f32 1.0, %v207
  %v209 = vrcp.pop %v181
  %v210 = vmul.f32 1.0, %v209
  %v211 = vrcp.pop %v182
  %v212 = vmul.f32 1.0, %v211
  %v213 = vrcp.pop %v183
  %v214 = vmul.f32 1.0, %v213
  %v215 = vrcp.pop %v184
  %v216 = vmul.f32 1.0, %v215
  %v233 = vlaneseq
  %v234 = vand.u32 %v233, 127
  %v235 = vlaneseq
  %v236 = vshrl.u32 %v235, 7
  %v237 = vsub.s32 %v234, %v236
  %v238 = vrot.slane %v186, %v237
  %v239 = vadd.s32 %v234, 4294967288
  %v240 = vlaneseq
  %v241 = vshrl.u32 %v240, 7
  %v242 = vsub.s32 %v239, %v241
  %v243 = vrot.slane %v188, %v242
  %vm244 = vcmask 130112
  %v245 = vsel %vm244, %v243, %v238
  %v246 = vadd.s32 %v234, 4294967280
  %v247 = vlaneseq
  %v248 = vshrl.u32 %v247, 7
  %v249 = vsub.s32 %v246, %v248
  %v250 = vrot.slane %v190, %v249
  %vm251 = vcmask 195712
  %v252 = vsel %vm251, %v250, %v245
  %v253 = vadd.s32 %v234, 4294967272
  %v254 = vlaneseq
  %v255 = vshrl.u32 %v254, 7
  %v256 = vsub.s32 %v253, %v255
  %v257 = vrot.slane %v192, %v256
  %vm258 = vcmask 261312
  %v259 = vsel %vm258, %v257, %v252
  %v260 = vadd.s32 %v234, 4294967264
  %v261 = vlaneseq
  %v262 = vshrl.u32 %v261, 7
  %v263 = vsub.s32 %v260, %v262
  %v264 = vrot.slane %v194, %v263
  %vm265 = vcmask 326912
  %v266 = vsel %vm265, %v264, %v259
  %v267 = vadd.s32 %v234, 4294967256
  %v268 = vlaneseq
  %v269 = vshrl.u32 %v268, 7
  %v270 = vsub.s32 %v267, %v269
  %v271 = vrot.slane %v196, %v270
  %vm272 = vcmask 392512
  %v273 = vsel %vm272, %v271, %v266
  %v274 = vadd.s32 %v234, 4294967248
  %v275 = vlaneseq
  %v276 = vshrl.u32 %v275, 7
  %v277 = vsub.s32 %v274, %v276
  %v278 = vrot.slane %v198, %v277
  %vm279 = vcmask 458112
  %v280 = vsel %vm279, %v278, %v273
  %v281 = vadd.s32 %v234, 4294967240
  %v282 = vlaneseq
  %v283 = vshrl.u32 %v282, 7
  %v284 = vsub.s32 %v281, %v283
  %v285 = vrot.slane %v200, %v284
  %vm286 = vcmask 523712
  %v287 = vsel %vm286, %v285, %v280
  %v288 = vadd.s32 %v234, 4294967232
  %v289 = vlaneseq
  %v290 = vshrl.u32 %v289, 7
  %v291 = vsub.s32 %v288, %v290
  %v292 = vrot.slane %v202, %v291
  %vm293 = vcmask 589312
  %v294 = vsel %vm293, %v292, %v287
  %v295 = vadd.s32 %v234, 4294967224
  %v296 = vlaneseq
  %v297 = vshrl.u32 %v296, 7
  %v298 = vsub.s32 %v295, %v297
  %v299 = vrot.slane %v204, %v298
  %vm300 = vcmask 654912
  %v301 = vsel %vm300, %v299, %v294
  %v302 = vadd.s32 %v234, 4294967216
  %v303 = vlaneseq
  %v304 = vshrl.u32 %v303, 7
  %v305 = vsub.s32 %v302, %v304
  %v306 = vrot.slane %v206, %v305
  %vm307 = vcmask 720512
  %v308 = vsel %vm307, %v306, %v301
  %v309 = vadd.s32 %v234, 4294967208
  %v310 = vlaneseq
  %v311 = vshrl.u32 %v310, 7
  %v312 = vsub.s32 %v309, %v311
  %v313 = vrot.slane %v208, %v312
  %vm314 = vcmask 786112
  %v315 = vsel %vm314, %v313, %v308
  %v316 = vadd.s32 %v234, 4294967200
  %v317 = vlaneseq
  %v318 = vshrl.u32 %v317, 7
  %v319 = vsub.s32 %v316, %v318
  %v320 = vrot.slane %v210, %v319
  %vm321 = vcmask 851712
  %v322 = vsel %vm321, %v320, %v315
  %v323 = vadd.s32 %v234, 4294967192
  %v324 = vlaneseq
  %v325 = vshrl.u32 %v324, 7
  %v326 = vsub.s32 %v323, %v325
  %v327 = vrot.slane %v212, %v326
  %vm328 = vcmask 917312
  %v329 = vsel %vm328, %v327, %v322
  %v330 = vadd.s32 %v234, 4294967184
  %v331 = vlaneseq
  %v332 = vshrl.u32 %v331, 7
  %v333 = vsub.s32 %v330, %v332
  %v334 = vrot.slane %v214, %v333
  %vm335 = vcmask 982912
  %v336 = vsel %vm335, %v334, %v329
  %v337 = vadd.s32 %v234, 4294967176
  %v338 = vlaneseq
  %v339 = vshrl.u32 %v338, 7
  %v340 = vsub.s32 %v337, %v339
  %v341 = vrot.slane %v216, %v340
  %vm342 = vcmask 1048512
  %v343 = vsel %vm342, %v341, %v336
  %345 = vst [vmem:[%s3] sm:$0x1] %v343
  // Predicated region
  $region14: #{logistic_regression_forward.1} parent=0 // pred_check
    _
  $region15: #{logistic_regression_forward.1} parent=0 // pred_check_branch
    %347 = sbr.rel (0) target = $region17
  $region16: #{logistic_regression_forward.1} parent=0 // pred_region
    _
  $region17: #{logistic_regression_forward.1} parent=0 // pred_fallthru
    _
  // Predicated region
  $region18: #{logistic_regression_forward.1} parent=0 // pred_check
    _
  $region19: #{logistic_regression_forward.1} parent=0 // pred_check_branch
    %349 = sbr.rel (0) target = $region21
  $region20: #{logistic_regression_forward.1} parent=0 // pred_region
    _
  $region21: #{logistic_regression_forward.1} parent=0 // pred_fallthru
    _

</llo_original>
